<compile_context>
chip_gen: v7x
topology: tpu7x:2x2x1
jax: 0.10.0
libtpu: 0.0.40
codegen_flags: <defaults>
</compile_context>

<pallas_src>
import functools

import jax
import jax.numpy as jnp
import numpy as np
from jax import lax
from jax.experimental import pallas as pl
from jax.experimental.pallas import tpu as pltpu

_LANES = 128


def _round_up(x: int, m: int) -> int:
    return ((x + m - 1) // m) * m


def _pick_tile(mp: int, max_tile: int) -> int:
    for t in (1024, 512, 256, 128):
        if t <= max_tile and t <= mp and mp % t == 0:
            return t
    return mp


def _chol_rsample_kernel(rows_ref, cols_ref,           # scalar prefetch (SMEM)
                         chol_ref, eps_ref, mu_ref,    # inputs  (VMEM tiles)
                         out_ref,                      # output  (VMEM tile)
                         acc_ref):                     # scratch (VMEM, f32)
    p = pl.program_id(1)
    r = rows_ref[p]                                    # row-block index
    c = cols_ref[p]                                    # col-block index (<= r)

    @pl.when(c == 0)                                   # first k-step of this row block
    def _init():
        acc_ref[...] = jnp.zeros_like(acc_ref)

    l_tile = chol_ref[...].astype(jnp.float32)         # (T, T)
    e_row = eps_ref[...].astype(jnp.float32)           # (1, T), broadcast over sublanes

    def _accumulate(tile):
        prod = tile * e_row                            # (T, T)  -- pure VPU
        folded = prod[:, 0:_LANES]                     # fold lane-blocks -> (T, 128)
        for j in range(1, prod.shape[1] // _LANES):
            folded = folded + prod[:, j * _LANES:(j + 1) * _LANES]
        acc_ref[...] += folded

    @pl.when(r != c)                                   # strictly-lower tile: no mask
    def _off_diag():
        _accumulate(l_tile)

    @pl.when(r == c)                                   # diagonal tile: mask + finalize
    def _diag_and_finalize():
        ri = lax.broadcasted_iota(jnp.int32, l_tile.shape, 0)
        ci = lax.broadcasted_iota(jnp.int32, l_tile.shape, 1)
        _accumulate(jnp.where(ri >= ci, l_tile, 0.0))
        # One XLU transpose + sublane reduce per output tile -> lane-dense row,
        # fused with the mu add and the store.
        acc_t = jnp.transpose(acc_ref[...])                    # (128, T)
        total = jnp.sum(acc_t, axis=0, keepdims=True)          # (1, T)
        out_ref[...] = (mu_ref[...].astype(jnp.float32) + total).astype(out_ref.dtype)


@functools.partial(jax.jit, static_argnames=("max_tile",))
def cholesky_variational_rsample(mu, chol, eps, *, max_tile=512):
    """Pallas TPU computation of  mu + tril(chol) @ eps.

    mu:   (B, M)
    chol: (B, M, M)   -- only the lower triangle is read (or DMA'd)
    eps:  (B, M)      -- standard-normal reparameterization noise
    """
    B, M = mu.shape
    assert chol.shape == (B, M, M) and eps.shape == (B, M)

    mp = _round_up(M, _LANES)
    tile = _pick_tile(mp, max_tile)
    nb = mp // tile

    if mp != M:
        mu_p = jnp.pad(mu, ((0, 0), (0, mp - M)))
        eps_p = jnp.pad(eps, ((0, 0), (0, mp - M)))
        chol_p = jnp.pad(chol, ((0, 0), (0, mp - M), (0, mp - M)))
    else:
        mu_p, eps_p, chol_p = mu, eps, chol

    # Lane-dense vector layout: (B, 1, Mp) keeps M on the lane axis.
    mu3 = mu_p.reshape(B, 1, mp)
    eps3 = eps_p.reshape(B, 1, mp)

    # Flattened lower-triangular tile coordinates; col ascends per row so the
    # diagonal tile is the last reduction step for each row block.
    pairs = [(r, c) for r in range(nb) for c in range(r + 1)]
    rows = jnp.asarray([r for r, _ in pairs], dtype=jnp.int32)
    cols = jnp.asarray([c for _, c in pairs], dtype=jnp.int32)
    n_pairs = len(pairs)

    grid_spec = pltpu.PrefetchScalarGridSpec(
        num_scalar_prefetch=2,
        grid=(B, n_pairs),
        in_specs=[
            # chol: only lower-triangular tiles are indexed -> only those are DMA'd.
            pl.BlockSpec((None, tile, tile),
                         lambda b, p, rows, cols: (b, rows[p], cols[p])),
            # eps chunk (column block)
            pl.BlockSpec((None, 1, tile),
                         lambda b, p, rows, cols: (b, 0, cols[p])),
            # mu chunk (row block)
            pl.BlockSpec((None, 1, tile),
                         lambda b, p, rows, cols: (b, 0, rows[p])),
        ],
        out_specs=pl.BlockSpec((None, 1, tile),
                               lambda b, p, rows, cols: (b, 0, rows[p])),
        scratch_shapes=[pltpu.VMEM((tile, _LANES), jnp.float32)],
    )

    chol_bytes = B * n_pairs * tile * tile * chol_p.dtype.itemsize
    vec_bytes = 3 * B * mp * mu_p.dtype.itemsize
    cost = pl.CostEstimate(flops=2 * B * n_pairs * tile * tile,
                           transcendentals=0,
                           bytes_accessed=chol_bytes + vec_bytes)

    out3 = pl.pallas_call(
        _chol_rsample_kernel,
        grid_spec=grid_spec,
        out_shape=jax.ShapeDtypeStruct((B, 1, mp), mu.dtype),
        compiler_params=pltpu.CompilerParams(
            dimension_semantics=("parallel", "arbitrary"),
            vmem_limit_bytes=48 * 1024 * 1024,
        ),
        cost_estimate=cost,
    )(rows, cols, chol_p, eps3, mu3)

    return out3.reshape(B, mp)[:, :M]


class CholeskyVariationalDist:
    """JAX/Pallas port of the PyTorch CholeskeyVariationalDist forward pass."""

    def __init__(self, num_inducing_points, batch_shape, mean_init_std=1e-3,
                 dtype=jnp.float32):
        self.num_inducing_points = num_inducing_points
        self.batch_shape = batch_shape
        self.mean_init_std = mean_init_std
        self.mu = jnp.zeros((batch_shape, num_inducing_points), dtype)
        self.chol_variational_covar = jnp.tile(
            jnp.eye(num_inducing_points, dtype=dtype)[None],
            (batch_shape, 1, 1))

    def forward(self, key):
        eps = jax.random.normal(key, self.mu.shape, dtype=self.mu.dtype)
        return cholesky_variational_rsample(self.mu, self.chol_variational_covar, eps)
    # TODO(synk): kl(), sigma/covar properties and initialize_variational_distribution()
    # are training-side utilities, not part of forward(); not implemented as kernels.


if __name__ == "__main__":
    B, M = 2, 20  # small module-consistent shapes; padded to 128 lanes internally
    key = jax.random.PRNGKey(0)
    k_mu, k_chol, k_eps, k_fwd = jax.random.split(key, 4)

    dist = CholeskyVariationalDist(num_inducing_points=M, batch_shape=B)

    # Exercise the default (identity-chol) module path once.
    _ = jax.block_until_ready(dist.forward(k_fwd))

    # Perturb parameters away from the identity init so the tril mask and the
    # mat-vec are actually exercised, then check against a pure-JAX reference.
    dist.mu = 0.05 * jax.random.normal(k_mu, (B, M), dtype=jnp.float32)
    dist.chol_variational_covar = (
        jnp.tile(jnp.eye(M, dtype=jnp.float32)[None], (B, 1, 1))
        + 0.1 * jax.random.normal(k_chol, (B, M, M), dtype=jnp.float32))

    eps = jax.random.normal(k_eps, (B, M), dtype=jnp.float32)
    sample = jax.block_until_ready(
        cholesky_variational_rsample(dist.mu, dist.chol_variational_covar, eps))

    expected = dist.mu + jnp.einsum(
        "bij,bj->bi", jnp.tril(dist.chol_variational_covar), eps)
    if not np.allclose(np.asarray(sample), np.asarray(expected),
                       rtol=1e-5, atol=1e-5):
        raise AssertionError("Pallas rsample mismatch vs pure-JAX reference")

    print("KERNEL_OK")
</pallas_src>

<mosaic_0001>
module attributes {stable_mosaic.version = 11 : i64} {
  func.func @_chol_rsample_kernel(%arg0: i32, %arg1: i32, %arg2: memref<1xi32, #tpu.memory_space<smem>>, %arg3: memref<1xi32, #tpu.memory_space<smem>>, %arg4: memref<1x128x128xf32, #tpu.memory_space<vmem>>, %arg5: memref<1x1x128xf32, #tpu.memory_space<vmem>>, %arg6: memref<1x1x128xf32, #tpu.memory_space<vmem>>, %arg7: memref<1x1x128xf32, #tpu.memory_space<vmem>>, %arg8: memref<128x128xf32, #tpu.memory_space<vmem>>) attributes {dimension_semantics = [#tpu.dimension_semantics<parallel>, #tpu.dimension_semantics<arbitrary>], iteration_bounds = array<i64: 2, 1>, scalar_prefetch = 2 : i64, scratch_operands = 1 : i64, tpu.core_type = #tpu.core_type<tc>, window_params = [{transform_indices = @transform_0, window_bounds = array<i64: 1, 128, 128>}, {transform_indices = @transform_1, window_bounds = array<i64: 1, 1, 128>}, {transform_indices = @transform_2, window_bounds = array<i64: 1, 1, 128>}, {transform_indices = @transform_3, window_bounds = array<i64: 1, 1, 128>}]} {
    %0 = arith.index_cast %arg1 : i32 to index
    %1 = memref.load %arg2[%0] : memref<1xi32, #tpu.memory_space<smem>>
    %2 = arith.index_cast %arg1 : i32 to index
    %3 = memref.load %arg3[%2] : memref<1xi32, #tpu.memory_space<smem>>
    %c0_i32 = arith.constant 0 : i32
    %4 = arith.cmpi eq, %3, %c0_i32 : i32
    %5 = arith.extui %4 : i1 to i32
    %c0_i32_0 = arith.constant 0 : i32
    %6 = arith.cmpi ne, %5, %c0_i32_0 : i32
    scf.if %6 {
      %cst = arith.constant 0.000000e+00 : f32
      %17 = vector.broadcast %cst : f32 to vector<128x128xf32>
      %c0_8 = arith.constant 0 : index
      %c0_9 = arith.constant 0 : index
      %18 = vector.load %arg8[%c0_8, %c0_9] : memref<128x128xf32, #tpu.memory_space<vmem>>, vector<128x128xf32>
      tpu.vector_store %arg8[%c0_8, %c0_9], %17 {strides = array<i32>} : memref<128x128xf32, #tpu.memory_space<vmem>>, vector<128x128xf32>,
    } else {
    }
    %c0 = arith.constant 0 : index
    %c0_1 = arith.constant 0 : index
    %c0_2 = arith.constant 0 : index
    %7 = vector.load %arg4[%c0, %c0_1, %c0_2] : memref<1x128x128xf32, #tpu.memory_space<vmem>>, vector<1x128x128xf32>
    %8 = vector.shape_cast %7 : vector<1x128x128xf32> to vector<128x128xf32>
    %c0_3 = arith.constant 0 : index
    %c0_4 = arith.constant 0 : index
    %c0_5 = arith.constant 0 : index
    %9 = vector.load %arg5[%c0_3, %c0_4, %c0_5] : memref<1x1x128xf32, #tpu.memory_space<vmem>>, vector<1x1x128xf32>
    %10 = vector.shape_cast %9 : vector<1x1x128xf32> to vector<1x128xf32>
    %11 = arith.cmpi ne, %1, %3 : i32
    %12 = arith.extui %11 : i1 to i32
    %c0_i32_6 = arith.constant 0 : i32
    %13 = arith.cmpi ne, %12, %c0_i32_6 : i32
    scf.if %13 {
      %17 = vector.broadcast %10 : vector<1x128xf32> to vector<128x128xf32>
      %18 = arith.mulf %8, %17 : vector<128x128xf32>
      %c0_8 = arith.constant 0 : index
      %c0_9 = arith.constant 0 : index
      %19 = vector.load %arg8[%c0_8, %c0_9] : memref<128x128xf32, #tpu.memory_space<vmem>>, vector<128x128xf32>
      %20 = arith.addf %19, %18 : vector<128x128xf32>
      %c0_10 = arith.constant 0 : index
      %c0_11 = arith.constant 0 : index
      %21 = vector.load %arg8[%c0_10, %c0_11] : memref<128x128xf32, #tpu.memory_space<vmem>>, vector<128x128xf32>
      tpu.vector_store %arg8[%c0_10, %c0_11], %20 {strides = array<i32>} : memref<128x128xf32, #tpu.memory_space<vmem>>, vector<128x128xf32>,
    } else {
    }
    %14 = arith.cmpi eq, %1, %3 : i32
    %15 = arith.extui %14 : i1 to i32
    %c0_i32_7 = arith.constant 0 : i32
    %16 = arith.cmpi ne, %15, %c0_i32_7 : i32
    scf.if %16 {
      %17 = tpu.iota {dimensions = array<i32: 0>} : vector<128x128xi32>
      %18 = tpu.iota {dimensions = array<i32: 1>} : vector<128x128xi32>
      %19 = arith.cmpi sge, %17, %18 : vector<128x128xi32>
      %cst = arith.constant 0.000000e+00 : f32
      %20 = vector.broadcast %cst : f32 to vector<128x128xf32>
      %21 = arith.select %19, %8, %20 : vector<128x128xi1>, vector<128x128xf32>
      %22 = vector.broadcast %10 : vector<1x128xf32> to vector<128x128xf32>
      %23 = arith.mulf %21, %22 : vector<128x128xf32>
      %c0_8 = arith.constant 0 : index
      %c0_9 = arith.constant 0 : index
      %24 = vector.load %arg8[%c0_8, %c0_9] : memref<128x128xf32, #tpu.memory_space<vmem>>, vector<128x128xf32>
      %25 = arith.addf %24, %23 : vector<128x128xf32>
      %c0_10 = arith.constant 0 : index
      %c0_11 = arith.constant 0 : index
      %26 = vector.load %arg8[%c0_10, %c0_11] : memref<128x128xf32, #tpu.memory_space<vmem>>, vector<128x128xf32>
      tpu.vector_store %arg8[%c0_10, %c0_11], %25 {strides = array<i32>} : memref<128x128xf32, #tpu.memory_space<vmem>>, vector<128x128xf32>,
      %c0_12 = arith.constant 0 : index
      %c0_13 = arith.constant 0 : index
      %27 = vector.load %arg8[%c0_12, %c0_13] : memref<128x128xf32, #tpu.memory_space<vmem>>, vector<128x128xf32>
      %28 = tpu.transpose %27, [1, 0] : vector<128x128xf32> -> vector<128x128xf32>
      %cst_14 = arith.constant dense<0.000000e+00> : vector<128xf32>
      %29 = vector.multi_reduction <add>, %28, %cst_14 [0] : vector<128x128xf32> to vector<128xf32>
      %30 = vector.shape_cast %29 : vector<128xf32> to vector<1x128xf32>
      %c0_15 = arith.constant 0 : index
      %c0_16 = arith.constant 0 : index
      %c0_17 = arith.constant 0 : index
      %31 = vector.load %arg6[%c0_15, %c0_16, %c0_17] : memref<1x1x128xf32, #tpu.memory_space<vmem>>, vector<1x1x128xf32>
      %32 = vector.shape_cast %31 : vector<1x1x128xf32> to vector<1x128xf32>
      %33 = arith.addf %32, %30 : vector<1x128xf32>
      %c0_18 = arith.constant 0 : index
      %c0_19 = arith.constant 0 : index
      %c0_20 = arith.constant 0 : index
      %34 = vector.load %arg7[%c0_18, %c0_19, %c0_20] : memref<1x1x128xf32, #tpu.memory_space<vmem>>, vector<1x1x128xf32>
      %35 = vector.shape_cast %34 : vector<1x1x128xf32> to vector<1x128xf32>
      %36 = vector.shape_cast %33 : vector<1x128xf32> to vector<1x1x128xf32>
      tpu.vector_store %arg7[%c0_18, %c0_19, %c0_20], %36 {strides = array<i32>} : memref<1x1x128xf32, #tpu.memory_space<vmem>>, vector<1x1x128xf32>,
    } else {
    }
    return
  }
  func.func @transform_0(%arg0: i32, %arg1: i32, %arg2: memref<1xi32, #tpu.memory_space<smem>>, %arg3: memref<1xi32, #tpu.memory_space<smem>>) -> (i32, i32, i32) {
    %0 = arith.index_cast %arg1 : i32 to index
    %1 = memref.load %arg2[%0] : memref<1xi32, #tpu.memory_space<smem>>
    %2 = arith.index_cast %arg1 : i32 to index
    %3 = memref.load %arg3[%2] : memref<1xi32, #tpu.memory_space<smem>>
    %c0_i32 = arith.constant 0 : i32
    return %arg0, %1, %3 : i32, i32, i32
  }
  func.func @transform_1(%arg0: i32, %arg1: i32, %arg2: memref<1xi32, #tpu.memory_space<smem>>, %arg3: memref<1xi32, #tpu.memory_space<smem>>) -> (i32, i32, i32) {
    %0 = arith.index_cast %arg1 : i32 to index
    %1 = memref.load %arg3[%0] : memref<1xi32, #tpu.memory_space<smem>>
    %c0_i32 = arith.constant 0 : i32
    %c0_i32_0 = arith.constant 0 : i32
    return %arg0, %c0_i32, %1 : i32, i32, i32
  }
  func.func @transform_2(%arg0: i32, %arg1: i32, %arg2: memref<1xi32, #tpu.memory_space<smem>>, %arg3: memref<1xi32, #tpu.memory_space<smem>>) -> (i32, i32, i32) {
    %0 = arith.index_cast %arg1 : i32 to index
    %1 = memref.load %arg2[%0] : memref<1xi32, #tpu.memory_space<smem>>
    %c0_i32 = arith.constant 0 : i32
    %c0_i32_0 = arith.constant 0 : i32
    return %arg0, %c0_i32, %1 : i32, i32, i32
  }
  func.func @transform_3(%arg0: i32, %arg1: i32, %arg2: memref<1xi32, #tpu.memory_space<smem>>, %arg3: memref<1xi32, #tpu.memory_space<smem>>) -> (i32, i32, i32) {
    %0 = arith.index_cast %arg1 : i32 to index
    %1 = memref.load %arg2[%0] : memref<1xi32, #tpu.memory_space<smem>>
    %c0_i32 = arith.constant 0 : i32
    %c0_i32_0 = arith.constant 0 : i32
    return %arg0, %c0_i32, %1 : i32, i32, i32
  }
}

</mosaic_0001>

<llo_original>
// kernel: cholesky_variational_rsample.1
$region0: #{cholesky_variational_rsample.1}
  #allocation0 [shape = 'u32[]', space=smem, size = 0x4, offset = 0x4, fixed_abs, tag = 'smem constant byte address 0x4 - core index']
  #allocation1 [shape = 'u32[144,128]{1,0:T(1,128)}', space=vmem, size = 0x12000, scoped, tag = 'internal scratch']
  #allocation2 [shape = 'f32[128,128]{1,0:T(8,128)}', space=vmem, size = 0x10000, scoped, tag = 'scratch operand']
  #allocation3 [shape = 's32[1]{0}', space=sflag, size = 0x4, scoped, tag = 'scoped memory for cholesky_variational_rsample.1']
  #allocation4 [shape = 's32[1]{0:T(128)S(6)}', space=smem, size = 0x200, scoped, tag = 'prefetched SMEM operand 0']
  #allocation5 [shape = 's32[1]{0:T(128)S(6)}', space=smem, size = 0x200, scoped, tag = 'prefetched SMEM operand 1']
  %s0 = inlined_call_operand.<no memory space> [shape: s32[1], index: 0, kind: input, shape index: {}, may-alias: {0,1}]
  %s1 = inlined_call_operand.<no memory space> [shape: s32[1], index: 1, kind: input, shape index: {}, may-alias: {0,1}]
  %s2 = inlined_call_operand.vmem [shape: f32[2,128,128], index: 2, kind: input, shape index: {}]
  %s3 = inlined_call_operand.vmem [shape: f32[2,1,128], index: 3, kind: input, shape index: {}]
  %s4 = inlined_call_operand.vmem [shape: f32[2,1,128], index: 4, kind: input, shape index: {}]
  %s5 = inlined_call_operand.hbm [shape: f32[2,1,128], index: 5, kind: output, shape index: {}]
  %s6 = sld [smem:[#allocation0]]
  $region57: #{cholesky_variational_rsample.1} parent=0
    _
  %s8 = ssub.s32 1, %s6
  %s9 = scalar_select 0, %s8, %s6
  %10 = sst [smem:[#allocation4]] %s0
  %11 = sst [smem:[#allocation5]] %s1
  $region1: #{cholesky_variational_rsample.1} parent=0
    #allocation6 [shape = 'u8[1024]{0}', space=vmem, size = 0x400, scoped, tag = 'output window, operand 0']
    #allocation7 [shape = 's32[2]{0}', space=sflag, size = 0x8, scoped, tag = 'scoped memory for cholesky_variational_rsample.1']
    %12 = vsyncpa [#allocation7], 0
    %s13 = scalar_lea.sflag [#allocation7], 1
    %14 = vsyncpa %s13, 0
    loop: start=0, step=1, limit=4
    $region2: #{cholesky_variational_rsample.1} parent=1 // loop_pre_header
      _
    $region3: #{cholesky_variational_rsample.1} parent=1 // loop_header
      %s16 = sphi 0, %s20
      %p17 = scmp.ge.s32.totalorder %s16, 4
      %s23 = sphi 0, %s35
      %s24 = sphi 0, %s31
      %s25 = sphi 0, %s23
      %s26 = sphi 0, %s24
      %s27 = sphi 0, %s25
      %s28 = sphi 0, %s26
      %s46 = sphi 0, %s48
      %s49 = sphi 0, %s46
      %s50 = sphi 0, %s49
      %s66 = sphi 0, %s50
      %s76 = sphi 0, %s78
      %s79 = sphi 0, %s76
      %s80 = sphi 0, %s79
      %s96 = sphi 0, %s80
      %s106 = sphi 0, %s108
      %s109 = sphi 0, %s106
      %s110 = sphi 0, %s109
      %s126 = sphi 0, %s110
      %s136 = sphi 0, %s138
      %s139 = sphi 0, %s136
      %s140 = sphi 0, %s139
      %s156 = sphi 0, %s140
    $region4: #{cholesky_variational_rsample.1} parent=1 // loop_header_branch
      %19 = sbr.rel (%p17) target = $region8
    $region5: #{cholesky_variational_rsample.1} parent=1 // loop_body
      %s21 = ssub.s32 %s16, 1
      %s22 = ssub.s32 %s16, 2
      %s29 = sadd.s32 1, %s24
      %p30 = scmp.ge.s32.totalorder %s29, 1
      %s31 = scalar_select %p30, 0, %s29
      %s32 = sadd.s32 1, %s23
      %s33 = scalar_select %p30, %s32, %s23
      %p34 = scmp.ge.s32.totalorder %s33, 2
      %s35 = scalar_select %p34, 0, %s33
      %s36 = sld [smem:[#allocation4 + %s24]]
      %s37 = sld [smem:[#allocation5 + %s24]]
      %s38 = sld [smem:[#allocation4 + %s31]]
      %s39 = sld [smem:[#allocation5 + %s31]]
      %s40 = ssub.s32 %s23, %s35
      %s41 = ssub.s32 %s36, %s38
      %s42 = sor.u32 %s40, %s41
      %s43 = ssub.s32 %s37, %s39
      %s44 = sor.u32 %s42, %s43
      %p45 = scmp.eq.s32.totalorder %s44, 0
      %s47 = sadd.s32 %s46, 1
      %s48 = scalar_select %p45, %s46, %s47
      %p51 = pneg %p45
      %p52 = scmp.eq.s32.totalorder %s16, 1
      %p53 = por %p51, %p52
      %p54 = scmp.ne.s32.totalorder %s46, %s49
      %p55 = scmp.eq.s32.totalorder %s16, 0
      %p56 = por %p54, %p55
      %p57 = scmp.ne.s32.totalorder %s46, %s49
      %p58 = scmp.eq.s32.totalorder %s21, 1
      %p59 = por %p57, %p58
      %p60 = scmp.ne.s32.totalorder %s49, %s50
      %p61 = scmp.eq.s32.totalorder %s21, 0
      %p62 = por %p60, %p61
      %p63 = scmp.ne.s32.totalorder %s49, %s50
      %p64 = scmp.eq.s32.totalorder %s22, 1
      %p65 = por %p63, %p64
      %p67 = scmp.ne.s32.totalorder %s50, %s66
      %p68 = scmp.eq.s32.totalorder %s22, 0
      %p69 = por %p67, %p68
      %s70 = sld [smem:[#allocation5 + %s24]]
      %s71 = sld [smem:[#allocation5 + %s31]]
      %s72 = ssub.s32 %s23, %s35
      %s73 = ssub.s32 %s70, %s71
      %s74 = sor.u32 %s72, %s73
      %p75 = scmp.eq.s32.totalorder %s74, 0
      %s77 = sadd.s32 %s76, 1
      %s78 = scalar_select %p75, %s76, %s77
      %p81 = pneg %p75
      %p82 = scmp.eq.s32.totalorder %s16, 1
      %p83 = por %p81, %p82
      %p84 = scmp.ne.s32.totalorder %s76, %s79
      %p85 = scmp.eq.s32.totalorder %s16, 0
      %p86 = por %p84, %p85
      %p87 = scmp.ne.s32.totalorder %s76, %s79
      %p88 = scmp.eq.s32.totalorder %s21, 1
      %p89 = por %p87, %p88
      %p90 = scmp.ne.s32.totalorder %s79, %s80
      %p91 = scmp.eq.s32.totalorder %s21, 0
      %p92 = por %p90, %p91
      %p93 = scmp.ne.s32.totalorder %s79, %s80
      %p94 = scmp.eq.s32.totalorder %s22, 1
      %p95 = por %p93, %p94
      %p97 = scmp.ne.s32.totalorder %s80, %s96
      %p98 = scmp.eq.s32.totalorder %s22, 0
      %p99 = por %p97, %p98
      %s100 = sld [smem:[#allocation4 + %s24]]
      %s101 = sld [smem:[#allocation4 + %s31]]
      %s102 = ssub.s32 %s23, %s35
      %s103 = ssub.s32 %s100, %s101
      %s104 = sor.u32 %s102, %s103
      %p105 = scmp.eq.s32.totalorder %s104, 0
      %s107 = sadd.s32 %s106, 1
      %s108 = scalar_select %p105, %s106, %s107
      %p111 = pneg %p105
      %p112 = scmp.eq.s32.totalorder %s16, 1
      %p113 = por %p111, %p112
      %p114 = scmp.ne.s32.totalorder %s106, %s109
      %p115 = scmp.eq.s32.totalorder %s16, 0
      %p116 = por %p114, %p115
      %p117 = scmp.ne.s32.totalorder %s106, %s109
      %p118 = scmp.eq.s32.totalorder %s21, 1
      %p119 = por %p117, %p118
      %p120 = scmp.ne.s32.totalorder %s109, %s110
      %p121 = scmp.eq.s32.totalorder %s21, 0
      %p122 = por %p120, %p121
      %p123 = scmp.ne.s32.totalorder %s109, %s110
      %p124 = scmp.eq.s32.totalorder %s22, 1
      %p125 = por %p123, %p124
      %p127 = scmp.ne.s32.totalorder %s110, %s126
      %p128 = scmp.eq.s32.totalorder %s22, 0
      %p129 = por %p127, %p128
      %s130 = sld [smem:[#allocation4 + %s24]]
      %s131 = sld [smem:[#allocation4 + %s31]]
      %s132 = ssub.s32 %s23, %s35
      %s133 = ssub.s32 %s130, %s131
      %s134 = sor.u32 %s132, %s133
      %p135 = scmp.eq.s32.totalorder %s134, 0
      %s137 = sadd.s32 %s136, 1
      %s138 = scalar_select %p135, %s136, %s137
      %p141 = pneg %p135
      %p142 = scmp.eq.s32.totalorder %s16, 1
      %p143 = por %p141, %p142
      %p144 = scmp.ne.s32.totalorder %s136, %s139
      %p145 = scmp.eq.s32.totalorder %s16, 0
      %p146 = por %p144, %p145
      %p147 = scmp.ne.s32.totalorder %s136, %s139
      %p148 = scmp.eq.s32.totalorder %s21, 1
      %p149 = por %p147, %p148
      %p150 = scmp.ne.s32.totalorder %s139, %s140
      %p151 = scmp.eq.s32.totalorder %s21, 0
      %p152 = por %p150, %p151
      %p153 = scmp.ne.s32.totalorder %s139, %s140
      %p154 = scmp.eq.s32.totalorder %s22, 1
      %p155 = por %p153, %p154
      %p157 = scmp.ne.s32.totalorder %s140, %s156
      %p158 = scmp.eq.s32.totalorder %s22, 0
      %p159 = por %p157, %p158
      %p160 = scmp.le.s32.totalorder 1, %s16
      %p161 = scmp.lt.s32.totalorder %s16, 3
      %p162 = pnand %p160, %p161
      %p163 = pneg %p162
      // Predicated region
      $region9: #{cholesky_variational_rsample.1} parent=5 // pred_check
        _
      $region10: #{cholesky_variational_rsample.1} parent=5 // pred_check_branch
        %165 = sbr.rel (%p162) target = $region12
      $region11: #{cholesky_variational_rsample.1} parent=5 // pred_region
        %s166 = ssub.s32 %s16, 1
      $region12: #{cholesky_variational_rsample.1} parent=5 // pred_fallthru
        _
      %p167 = scmp.lt.s32.totalorder %s16, 2
      // Predicated region
      $region13: #{cholesky_variational_rsample.1} parent=5 // pred_check
        %p168 = pneg %p167
      $region14: #{cholesky_variational_rsample.1} parent=5 // pred_check_branch
        %170 = sbr.rel (%p168) target = $region16
      $region15: #{cholesky_variational_rsample.1} parent=5 // pred_region
        // Predicated region
        $region17: #{cholesky_variational_rsample.1} parent=15 // pred_check
          %p171 = pneg %p56
        $region18: #{cholesky_variational_rsample.1} parent=15 // pred_check_branch
          %173 = sbr.rel (%p171) target = $region20
        $region19: #{cholesky_variational_rsample.1} parent=15 // pred_region
          %s174 = sld [smem:[#allocation4 + %s24]]
          %s175 = sld [smem:[#allocation5 + %s24]]
          %s176 = smul.u32 16, %s174
          %p177 = scmp.lt.s32.totalorder %s23, 1
          %s178 = scalar_select %p177, %s23, 1
          %p179 = scmp.lt.s32.totalorder %s176, 15
          %s180 = scalar_select %p179, %s176, 15
          %p181 = scmp.lt.s32.totalorder %s175, 0
          %s182 = scalar_select %p181, %s175, 0
          %s183 = sadd.s32 %s182, %s180
          %s184 = smul.addr %s178, 16
          %s185 = sadd.s32 %s183, %s184
          %s186 = smul.addr %s185, 8
          %s187 = scalar_lea.vmem %s2, %s186
          %s188 = sld [smem:[#allocation4 + %s24]]
          %s189 = sld [smem:[#allocation5 + %s24]]
          %s190 = smul.u32 16, %s188
        $region20: #{cholesky_variational_rsample.1} parent=15 // pred_fallthru
          _
        // Predicated region
        $region21: #{cholesky_variational_rsample.1} parent=15 // pred_check
          %p191 = pneg %p86
        $region22: #{cholesky_variational_rsample.1} parent=15 // pred_check_branch
          %193 = sbr.rel (%p191) target = $region24
        $region23: #{cholesky_variational_rsample.1} parent=15 // pred_region
          %s194 = sld [smem:[#allocation5 + %s24]]
          %p195 = scmp.lt.s32.totalorder %s23, 1
          %s196 = scalar_select %p195, %s23, 1
          %p197 = scmp.lt.s32.totalorder %s194, 0
          %s198 = scalar_select %p197, %s194, 0
          %s199 = sadd.s32 %s198, %s196
          %s200 = scalar_lea.vmem %s3, %s199
          %s201 = sld [smem:[#allocation5 + %s24]]
        $region24: #{cholesky_variational_rsample.1} parent=15 // pred_fallthru
          _
        // Predicated region
        $region25: #{cholesky_variational_rsample.1} parent=15 // pred_check
          %p202 = pneg %p116
        $region26: #{cholesky_variational_rsample.1} parent=15 // pred_check_branch
          %204 = sbr.rel (%p202) target = $region28
        $region27: #{cholesky_variational_rsample.1} parent=15 // pred_region
          %s205 = sld [smem:[#allocation4 + %s24]]
          %p206 = scmp.lt.s32.totalorder %s23, 1
          %s207 = scalar_select %p206, %s23, 1
          %p208 = scmp.lt.s32.totalorder %s205, 0
          %s209 = scalar_select %p208, %s205, 0
          %s210 = sadd.s32 %s209, %s207
          %s211 = scalar_lea.vmem %s4, %s210
          %s212 = sld [smem:[#allocation4 + %s24]]
        $region28: #{cholesky_variational_rsample.1} parent=15 // pred_fallthru
          _
      $region16: #{cholesky_variational_rsample.1} parent=5 // pred_fallthru
        _
      %p213 = scmp.le.s32.totalorder 1, %s16
      %p214 = scmp.lt.s32.totalorder %s16, 3
      %p215 = pnand %p213, %p214
      %p216 = pneg %p215
      // Predicated region
      $region29: #{cholesky_variational_rsample.1} parent=5 // pred_check
        _
      $region30: #{cholesky_variational_rsample.1} parent=5 // pred_check_branch
        %218 = sbr.rel (%p215) target = $region32
      $region31: #{cholesky_variational_rsample.1} parent=5 // pred_region
        %s219 = ssub.s32 %s16, 1
        %s220 = sld [smem:[#allocation4 + %s26]]
        %s221 = sld [smem:[#allocation5 + %s26]]
        %s222 = smul.u32 16, %s220
        %p223 = scmp.lt.s32.totalorder %s25, 1
        %s224 = scalar_select %p223, %s25, 1
        %p225 = scmp.lt.s32.totalorder %s222, 15
        %s226 = scalar_select %p225, %s222, 15
        %p227 = scmp.lt.s32.totalorder %s221, 0
        %s228 = scalar_select %p227, %s221, 0
        %s229 = sadd.s32 %s228, %s226
        %s230 = smul.addr %s224, 16
        %s231 = sadd.s32 %s229, %s230
        %s232 = smul.addr %s231, 8
        %s233 = scalar_lea.vmem %s2, %s232
        %p234 = pneg %p62
        %p235 = pneg %p59
        %s236 = sld [smem:[#allocation5 + %s26]]
        %p237 = scmp.lt.s32.totalorder %s25, 1
        %s238 = scalar_select %p237, %s25, 1
        %p239 = scmp.lt.s32.totalorder %s236, 0
        %s240 = scalar_select %p239, %s236, 0
        %s241 = sadd.s32 %s240, %s238
        %s242 = scalar_lea.vmem %s3, %s241
        %p243 = pneg %p92
        %p244 = pneg %p89
        %s245 = sld [smem:[#allocation4 + %s26]]
        %p246 = scmp.lt.s32.totalorder %s25, 1
        %s247 = scalar_select %p246, %s25, 1
        %p248 = scmp.lt.s32.totalorder %s245, 0
        %s249 = scalar_select %p248, %s245, 0
        %s250 = sadd.s32 %s249, %s247
        %s251 = scalar_lea.vmem %s4, %s250
        %p252 = pneg %p122
        %p253 = pneg %p119
        %p254 = pneg %p152
        %p255 = pneg %p149
        %s256 = sand.u32 %s139, 1
        %s257 = scalar_lea.sflag [#allocation7], %s256
        %s258 = sand.u32 %s139, 1
        %s259 = scalar_lea.vmem [#allocation6], %s258
        %s260 = sld [smem:[#allocation4 + %s26]]
        %s261 = sld [smem:[#allocation5 + %s26]]
        %s262 = smul.u32 16, %s260
        %p263 = scmp.lt.s32.totalorder %s25, 1
        %s264 = scalar_select %p263, %s25, 1
        %p265 = scmp.lt.s32.totalorder %s262, 15
        %s266 = scalar_select %p265, %s262, 15
        %p267 = scmp.lt.s32.totalorder %s261, 0
        %s268 = scalar_select %p267, %s261, 0
        %s269 = sadd.s32 %s268, %s266
        %s270 = smul.addr %s264, 16
        %s271 = sadd.s32 %s269, %s270
        %s272 = smul.addr %s271, 8
        %s273 = scalar_lea.vmem %s2, %s272
        %s274 = sld [smem:[#allocation4 + %s26]]
        %s275 = sld [smem:[#allocation5 + %s26]]
        %s276 = smul.u32 16, %s274
        %s277 = sld [smem:[#allocation5 + %s26]]
        %p278 = scmp.lt.s32.totalorder %s25, 1
        %s279 = scalar_select %p278, %s25, 1
        %p280 = scmp.lt.s32.totalorder %s277, 0
        %s281 = scalar_select %p280, %s277, 0
        %s282 = sadd.s32 %s281, %s279
        %s283 = scalar_lea.vmem %s3, %s282
        %s284 = sld [smem:[#allocation5 + %s26]]
        %s285 = sld [smem:[#allocation4 + %s26]]
        %p286 = scmp.lt.s32.totalorder %s25, 1
        %s287 = scalar_select %p286, %s25, 1
        %p288 = scmp.lt.s32.totalorder %s285, 0
        %s289 = scalar_select %p288, %s285, 0
        %s290 = sadd.s32 %s289, %s287
        %s291 = scalar_lea.vmem %s4, %s290
        %s292 = sld [smem:[#allocation4 + %s26]]
        %s293 = sld [smem:[#allocation4 + %s26]]
        %s294 = sld [smem:[#allocation4 + %s26]]
        %s295 = sld [smem:[#allocation5 + %s26]]
        %p296 = scmp.eq.s32.totalorder %s295, 0
        // Predicated region
        $region33: #{cholesky_variational_rsample.1} parent=31 // pred_check
          %p297 = pneg %p296
        $region34: #{cholesky_variational_rsample.1} parent=31 // pred_check_branch
          %299 = sbr.rel (%p297) target = $region36
        $region35: #{cholesky_variational_rsample.1} parent=31 // pred_region
          %300 = vst [vmem:[#allocation2] sm:$0xff] 0.0
          %301 = vst [vmem:[#allocation2 + $0x8] sm:$0xff] 0.0
          %302 = vst [vmem:[#allocation2 + $0x10] sm:$0xff] 0.0
          %303 = vst [vmem:[#allocation2 + $0x18] sm:$0xff] 0.0
          %304 = vst [vmem:[#allocation2 + $0x20] sm:$0xff] 0.0
          %305 = vst [vmem:[#allocation2 + $0x28] sm:$0xff] 0.0
          %306 = vst [vmem:[#allocation2 + $0x30] sm:$0xff] 0.0
          %307 = vst [vmem:[#allocation2 + $0x38] sm:$0xff] 0.0
          %308 = vst [vmem:[#allocation2 + $0x40] sm:$0xff] 0.0
          %309 = vst [vmem:[#allocation2 + $0x48] sm:$0xff] 0.0
          %310 = vst [vmem:[#allocation2 + $0x50] sm:$0xff] 0.0
          %311 = vst [vmem:[#allocation2 + $0x58] sm:$0xff] 0.0
          %312 = vst [vmem:[#allocation2 + $0x60] sm:$0xff] 0.0
          %313 = vst [vmem:[#allocation2 + $0x68] sm:$0xff] 0.0
          %314 = vst [vmem:[#allocation2 + $0x70] sm:$0xff] 0.0
          %315 = vst [vmem:[#allocation2 + $0x78] sm:$0xff] 0.0
        $region36: #{cholesky_variational_rsample.1} parent=31 // pred_fallthru
          _
        %v316 = vld [vmem:[%s273] sm:$0xff]
        %v317 = vld [vmem:[%s273 + $0x8] sm:$0xff]
        %v318 = vld [vmem:[%s273 + $0x10] sm:$0xff]
        %v319 = vld [vmem:[%s273 + $0x18] sm:$0xff]
        %v320 = vld [vmem:[%s273 + $0x20] sm:$0xff]
        %v321 = vld [vmem:[%s273 + $0x28] sm:$0xff]
        %v322 = vld [vmem:[%s273 + $0x30] sm:$0xff]
        %v323 = vld [vmem:[%s273 + $0x38] sm:$0xff]
        %v324 = vld [vmem:[%s273 + $0x40] sm:$0xff]
        %v325 = vld [vmem:[%s273 + $0x48] sm:$0xff]
        %v326 = vld [vmem:[%s273 + $0x50] sm:$0xff]
        %v327 = vld [vmem:[%s273 + $0x58] sm:$0xff]
        %v328 = vld [vmem:[%s273 + $0x60] sm:$0xff]
        %v329 = vld [vmem:[%s273 + $0x68] sm:$0xff]
        %v330 = vld [vmem:[%s273 + $0x70] sm:$0xff]
        %v331 = vld [vmem:[%s273 + $0x78] sm:$0xff]
        %v332 = vld [vmem:[%s283] sm:$0x1]
        %p333 = scmp.ne.s32.totalorder %s294, %s295
        // Predicated region
        $region37: #{cholesky_variational_rsample.1} parent=31 // pred_check
          %p334 = pneg %p333
        $region38: #{cholesky_variational_rsample.1} parent=31 // pred_check_branch
          %336 = sbr.rel (%p334) target = $region40
        $region39: #{cholesky_variational_rsample.1} parent=31 // pred_region
          %v338 = vlaneseq
          %v339 = vshrl.u32 %v338, 7
          %v340 = vsub.s32 0, %v339
          %v341 = vrot.slane %v332, %v340
          %v343 = vmul.f32 %v316, %v341
          %v344 = vmul.f32 %v317, %v341
          %v345 = vmul.f32 %v318, %v341
          %v346 = vmul.f32 %v319, %v341
          %v347 = vmul.f32 %v320, %v341
          %v348 = vmul.f32 %v321, %v341
          %v349 = vmul.f32 %v322, %v341
          %v350 = vmul.f32 %v323, %v341
          %v351 = vmul.f32 %v324, %v341
          %v352 = vmul.f32 %v325, %v341
          %v353 = vmul.f32 %v326, %v341
          %v354 = vmul.f32 %v327, %v341
          %v355 = vmul.f32 %v328, %v341
          %v356 = vmul.f32 %v329, %v341
          %v357 = vmul.f32 %v330, %v341
          %v358 = vmul.f32 %v331, %v341
          %v359 = vld [vmem:[#allocation2] sm:$0xff]
          %v360 = vld [vmem:[#allocation2 + $0x8] sm:$0xff]
          %v361 = vld [vmem:[#allocation2 + $0x10] sm:$0xff]
          %v362 = vld [vmem:[#allocation2 + $0x18] sm:$0xff]
          %v363 = vld [vmem:[#allocation2 + $0x20] sm:$0xff]
          %v364 = vld [vmem:[#allocation2 + $0x28] sm:$0xff]
          %v365 = vld [vmem:[#allocation2 + $0x30] sm:$0xff]
          %v366 = vld [vmem:[#allocation2 + $0x38] sm:$0xff]
          %v367 = vld [vmem:[#allocation2 + $0x40] sm:$0xff]
          %v368 = vld [vmem:[#allocation2 + $0x48] sm:$0xff]
          %v369 = vld [vmem:[#allocation2 + $0x50] sm:$0xff]
          %v370 = vld [vmem:[#allocation2 + $0x58] sm:$0xff]
          %v371 = vld [vmem:[#allocation2 + $0x60] sm:$0xff]
          %v372 = vld [vmem:[#allocation2 + $0x68] sm:$0xff]
          %v373 = vld [vmem:[#allocation2 + $0x70] sm:$0xff]
          %v374 = vld [vmem:[#allocation2 + $0x78] sm:$0xff]
          %v375 = vadd.f32 %v359, %v343
          %v376 = vadd.f32 %v360, %v344
          %v377 = vadd.f32 %v361, %v345
          %v378 = vadd.f32 %v362, %v346
          %v379 = vadd.f32 %v363, %v347
          %v380 = vadd.f32 %v364, %v348
          %v381 = vadd.f32 %v365, %v349
          %v382 = vadd.f32 %v366, %v350
          %v383 = vadd.f32 %v367, %v351
          %v384 = vadd.f32 %v368, %v352
          %v385 = vadd.f32 %v369, %v353
          %v386 = vadd.f32 %v370, %v354
          %v387 = vadd.f32 %v371, %v355
          %v388 = vadd.f32 %v372, %v356
          %v389 = vadd.f32 %v373, %v357
          %v390 = vadd.f32 %v374, %v358
          %391 = vst [vmem:[#allocation2] sm:$0xff] %v375
          %392 = vst [vmem:[#allocation2 + $0x8] sm:$0xff] %v376
          %393 = vst [vmem:[#allocation2 + $0x10] sm:$0xff] %v377
          %394 = vst [vmem:[#allocation2 + $0x18] sm:$0xff] %v378
          %395 = vst [vmem:[#allocation2 + $0x20] sm:$0xff] %v379
          %396 = vst [vmem:[#allocation2 + $0x28] sm:$0xff] %v380
          %397 = vst [vmem:[#allocation2 + $0x30] sm:$0xff] %v381
          %398 = vst [vmem:[#allocation2 + $0x38] sm:$0xff] %v382
          %399 = vst [vmem:[#allocation2 + $0x40] sm:$0xff] %v383
          %400 = vst [vmem:[#allocation2 + $0x48] sm:$0xff] %v384
          %401 = vst [vmem:[#allocation2 + $0x50] sm:$0xff] %v385
          %402 = vst [vmem:[#allocation2 + $0x58] sm:$0xff] %v386
          %403 = vst [vmem:[#allocation2 + $0x60] sm:$0xff] %v387
          %404 = vst [vmem:[#allocation2 + $0x68] sm:$0xff] %v388
          %405 = vst [vmem:[#allocation2 + $0x70] sm:$0xff] %v389
          %406 = vst [vmem:[#allocation2 + $0x78] sm:$0xff] %v390
        $region40: #{cholesky_variational_rsample.1} parent=31 // pred_fallthru
          _
        %p407 = scmp.eq.s32.totalorder %s294, %s295
        // Predicated region
        $region41: #{cholesky_variational_rsample.1} parent=31 // pred_check
          %p408 = pneg %p407
        $region42: #{cholesky_variational_rsample.1} parent=31 // pred_check_branch
          %410 = sbr.rel (%p408) target = $region44
        $region43: #{cholesky_variational_rsample.1} parent=31 // pred_region
          %v411 = vlaneseq
          %v412 = vshrl.u32 %v411, 7
          %v413 = vadd.s32 %v412, 8
          %v414 = vadd.s32 %v412, 16
          %v415 = vadd.s32 %v412, 24
          %v416 = vadd.s32 %v412, 32
          %v417 = vadd.s32 %v412, 40
          %v418 = vadd.s32 %v412, 48
          %v419 = vadd.s32 %v412, 56
          %v420 = vadd.s32 %v412, 64
          %v421 = vadd.s32 %v412, 72
          %v422 = vadd.s32 %v412, 80
          %v423 = vadd.s32 %v412, 88
          %v424 = vadd.s32 %v412, 96
          %v425 = vadd.s32 %v412, 104
          %v426 = vadd.s32 %v412, 112
          %v427 = vadd.s32 %v412, 120
          %v428 = vlaneseq
          %v429 = vand.u32 %v428, 127
          %vm430 = vcmp.ge.s32.totalorder %v412, %v429
          %vm431 = vcmp.ge.s32.totalorder %v413, %v429
          %vm432 = vcmp.ge.s32.totalorder %v414, %v429
          %vm433 = vcmp.ge.s32.totalorder %v415, %v429
          %vm434 = vcmp.ge.s32.totalorder %v416, %v429
          %vm435 = vcmp.ge.s32.totalorder %v417, %v429
          %vm436 = vcmp.ge.s32.totalorder %v418, %v429
          %vm437 = vcmp.ge.s32.totalorder %v419, %v429
          %vm438 = vcmp.ge.s32.totalorder %v420, %v429
          %vm439 = vcmp.ge.s32.totalorder %v421, %v429
          %vm440 = vcmp.ge.s32.totalorder %v422, %v429
          %vm441 = vcmp.ge.s32.totalorder %v423, %v429
          %vm442 = vcmp.ge.s32.totalorder %v424, %v429
          %vm443 = vcmp.ge.s32.totalorder %v425, %v429
          %vm444 = vcmp.ge.s32.totalorder %v426, %v429
          %vm445 = vcmp.ge.s32.totalorder %v427, %v429
          %v446 = vsel %vm430, %v316, 0.0
          %v447 = vsel %vm431, %v317, 0.0
          %v448 = vsel %vm432, %v318, 0.0
          %v449 = vsel %vm433, %v319, 0.0
          %v450 = vsel %vm434, %v320, 0.0
          %v451 = vsel %vm435, %v321, 0.0
          %v452 = vsel %vm436, %v322, 0.0
          %v453 = vsel %vm437, %v323, 0.0
          %v454 = vsel %vm438, %v324, 0.0
          %v455 = vsel %vm439, %v325, 0.0
          %v456 = vsel %vm440, %v326, 0.0
          %v457 = vsel %vm441, %v327, 0.0
          %v458 = vsel %vm442, %v328, 0.0
          %v459 = vsel %vm443, %v329, 0.0
          %v460 = vsel %vm444, %v330, 0.0
          %v461 = vsel %vm445, %v331, 0.0
          %v463 = vlaneseq
          %v464 = vshrl.u32 %v463, 7
          %v465 = vsub.s32 0, %v464
          %v466 = vrot.slane %v332, %v465
          %v468 = vmul.f32 %v446, %v466
          %v469 = vmul.f32 %v447, %v466
          %v470 = vmul.f32 %v448, %v466
          %v471 = vmul.f32 %v449, %v466
          %v472 = vmul.f32 %v450, %v466
          %v473 = vmul.f32 %v451, %v466
          %v474 = vmul.f32 %v452, %v466
          %v475 = vmul.f32 %v453, %v466
          %v476 = vmul.f32 %v454, %v466
          %v477 = vmul.f32 %v455, %v466
          %v478 = vmul.f32 %v456, %v466
          %v479 = vmul.f32 %v457, %v466
          %v480 = vmul.f32 %v458, %v466
          %v481 = vmul.f32 %v459, %v466
          %v482 = vmul.f32 %v460, %v466
          %v483 = vmul.f32 %v461, %v466
          %v484 = vld [vmem:[#allocation2] sm:$0xff]
          %v485 = vld [vmem:[#allocation2 + $0x8] sm:$0xff]
          %v486 = vld [vmem:[#allocation2 + $0x10] sm:$0xff]
          %v487 = vld [vmem:[#allocation2 + $0x18] sm:$0xff]
          %v488 = vld [vmem:[#allocation2 + $0x20] sm:$0xff]
          %v489 = vld [vmem:[#allocation2 + $0x28] sm:$0xff]
          %v490 = vld [vmem:[#allocation2 + $0x30] sm:$0xff]
          %v491 = vld [vmem:[#allocation2 + $0x38] sm:$0xff]
          %v492 = vld [vmem:[#allocation2 + $0x40] sm:$0xff]
          %v493 = vld [vmem:[#allocation2 + $0x48] sm:$0xff]
          %v494 = vld [vmem:[#allocation2 + $0x50] sm:$0xff]
          %v495 = vld [vmem:[#allocation2 + $0x58] sm:$0xff]
          %v496 = vld [vmem:[#allocation2 + $0x60] sm:$0xff]
          %v497 = vld [vmem:[#allocation2 + $0x68] sm:$0xff]
          %v498 = vld [vmem:[#allocation2 + $0x70] sm:$0xff]
          %v499 = vld [vmem:[#allocation2 + $0x78] sm:$0xff]
          %v500 = vadd.f32 %v484, %v468
          %v501 = vadd.f32 %v485, %v469
          %v502 = vadd.f32 %v486, %v470
          %v503 = vadd.f32 %v487, %v471
          %v504 = vadd.f32 %v488, %v472
          %v505 = vadd.f32 %v489, %v473
          %v506 = vadd.f32 %v490, %v474
          %v507 = vadd.f32 %v491, %v475
          %v508 = vadd.f32 %v492, %v476
          %v509 = vadd.f32 %v493, %v477
          %v510 = vadd.f32 %v494, %v478
          %v511 = vadd.f32 %v495, %v479
          %v512 = vadd.f32 %v496, %v480
          %v513 = vadd.f32 %v497, %v481
          %v514 = vadd.f32 %v498, %v482
          %v515 = vadd.f32 %v499, %v483
          %516 = vst [vmem:[#allocation2] sm:$0xff] %v500
          %517 = vst [vmem:[#allocation2 + $0x8] sm:$0xff] %v501
          %518 = vst [vmem:[#allocation2 + $0x10] sm:$0xff] %v502
          %519 = vst [vmem:[#allocation2 + $0x18] sm:$0xff] %v503
          %520 = vst [vmem:[#allocation2 + $0x20] sm:$0xff] %v504
          %521 = vst [vmem:[#allocation2 + $0x28] sm:$0xff] %v505
          %522 = vst [vmem:[#allocation2 + $0x30] sm:$0xff] %v506
          %523 = vst [vmem:[#allocation2 + $0x38] sm:$0xff] %v507
          %524 = vst [vmem:[#allocation2 + $0x40] sm:$0xff] %v508
          %525 = vst [vmem:[#allocation2 + $0x48] sm:$0xff] %v509
          %526 = vst [vmem:[#allocation2 + $0x50] sm:$0xff] %v510
          %527 = vst [vmem:[#allocation2 + $0x58] sm:$0xff] %v511
          %528 = vst [vmem:[#allocation2 + $0x60] sm:$0xff] %v512
          %529 = vst [vmem:[#allocation2 + $0x68] sm:$0xff] %v513
          %530 = vst [vmem:[#allocation2 + $0x70] sm:$0xff] %v514
          %531 = vst [vmem:[#allocation2 + $0x78] sm:$0xff] %v515
          %v532 = vld [vmem:[#allocation2] sm:$0xff]
          %v533 = vld [vmem:[#allocation2 + $0x8] sm:$0xff]
          %v534 = vld [vmem:[#allocation2 + $0x10] sm:$0xff]
          %v535 = vld [vmem:[#allocation2 + $0x18] sm:$0xff]
          %v536 = vld [vmem:[#allocation2 + $0x20] sm:$0xff]
          %v537 = vld [vmem:[#allocation2 + $0x28] sm:$0xff]
          %v538 = vld [vmem:[#allocation2 + $0x30] sm:$0xff]
          %v539 = vld [vmem:[#allocation2 + $0x38] sm:$0xff]
          %v540 = vld [vmem:[#allocation2 + $0x40] sm:$0xff]
          %v541 = vld [vmem:[#allocation2 + $0x48] sm:$0xff]
          %v542 = vld [vmem:[#allocation2 + $0x50] sm:$0xff]
          %v543 = vld [vmem:[#allocation2 + $0x58] sm:$0xff]
          %v544 = vld [vmem:[#allocation2 + $0x60] sm:$0xff]
          %v545 = vld [vmem:[#allocation2 + $0x68] sm:$0xff]
          %v546 = vld [vmem:[#allocation2 + $0x70] sm:$0xff]
          %v547 = vld [vmem:[#allocation2 + $0x78] sm:$0xff]
          %548 = vxpose.xlu0.b32.start [1/16] %v532, 128
          %549 = vxpose.xlu0.b32.cont [2/16] %v533, 128
          %550 = vxpose.xlu0.b32.cont [3/16] %v534, 128
          %551 = vxpose.xlu0.b32.cont [4/16] %v535, 128
          %552 = vxpose.xlu0.b32.cont [5/16] %v536, 128
          %553 = vxpose.xlu0.b32.cont [6/16] %v537, 128
          %554 = vxpose.xlu0.b32.cont [7/16] %v538, 128
          %555 = vxpose.xlu0.b32.cont [8/16] %v539, 128
          %556 = vxpose.xlu0.b32.cont [9/16] %v540, 128
          %557 = vxpose.xlu0.b32.cont [10/16] %v541, 128
          %558 = vxpose.xlu0.b32.cont [11/16] %v542, 128
          %559 = vxpose.xlu0.b32.cont [12/16] %v543, 128
          %560 = vxpose.xlu0.b32.cont [13/16] %v544, 128
          %561 = vxpose.xlu0.b32.cont [14/16] %v545, 128
          %562 = vxpose.xlu0.b32.cont [15/16] %v546, 128
          %563 = vxpose.xlu0.b32.end [16/16] %v547, 128
          %v564 = vpop.trf.xlu0
          %v565 = vpop.trf.xlu0
          %v566 = vpop.trf.xlu0
          %v567 = vpop.trf.xlu0
          %v568 = vpop.trf.xlu0
          %v569 = vpop.trf.xlu0
          %v570 = vpop.trf.xlu0
          %v571 = vpop.trf.xlu0
          %v572 = vpop.trf.xlu0
          %v573 = vpop.trf.xlu0
          %v574 = vpop.trf.xlu0
          %v575 = vpop.trf.xlu0
          %v576 = vpop.trf.xlu0
          %v577 = vpop.trf.xlu0
          %v578 = vpop.trf.xlu0
          %v579 = vpop.trf.xlu0
          %v580 = vadd.f32 %v564, %v565
          %v581 = vadd.f32 %v580, %v566
          %v582 = vadd.f32 %v581, %v567
          %v583 = vadd.f32 %v582, %v568
          %v584 = vadd.f32 %v583, %v569
          %v585 = vadd.f32 %v584, %v570
          %v586 = vadd.f32 %v585, %v571
          %v587 = vadd.f32 %v586, %v572
          %v588 = vadd.f32 %v587, %v573
          %v589 = vadd.f32 %v588, %v574
          %v590 = vadd.f32 %v589, %v575
          %v591 = vadd.f32 %v590, %v576
          %v592 = vadd.f32 %v591, %v577
          %v593 = vadd.f32 %v592, %v578
          %v594 = vadd.f32 %v593, %v579
          %v595 = vrot.slane %v594, 4
          %v596 = vadd.f32 %v594, %v595
          %v597 = vrot.slane %v596, 2
          %v598 = vadd.f32 %v596, %v597
          %v599 = vrot.slane %v598, 1
          %v600 = vadd.f32 %v598, %v599
          %v601 = vld [vmem:[%s291] sm:$0x1]
          %v602 = vadd.f32 %v601, %v600
          %603 = vst [vmem:[%s259] sm:$0x1] %v602
        $region44: #{cholesky_variational_rsample.1} parent=31 // pred_fallthru
          _
        %s604 = sand.u32 %s139, 1
        %s605 = scalar_lea.sflag [#allocation7], %s604
        %s606 = sand.u32 %s139, 1
        %s607 = scalar_lea.vmem [#allocation6], %s606
        // Predicated region
        $region45: #{cholesky_variational_rsample.1} parent=31 // pred_check
          %p608 = pneg %p149
        $region46: #{cholesky_variational_rsample.1} parent=31 // pred_check_branch
          %610 = sbr.rel (%p608) target = $region48
        $region47: #{cholesky_variational_rsample.1} parent=31 // pred_region
          %s611 = sld [smem:[#allocation4 + %s26]]
          %s613 = ssub.s32 16, 16
          %614 = vsyncadd %s605, %s613
          %s615 = sadd.s32 %s611, %s25
          %s616 = smul.addr %s615, 16
          %s617 = scalar_lea.hbm %s5, %s616
          %s619 = sshll.u32 %s607, 4
          %s620 = int_to_ptr.vmem [resolvable:$true] %s619
          %622 = dma.vmem_to_hbm [thread:$0]  %s620, 16, %s617, %s605
        $region48: #{cholesky_variational_rsample.1} parent=31 // pred_fallthru
          _
      $region32: #{cholesky_variational_rsample.1} parent=5 // pred_fallthru
        _
      %p623 = scmp.le.s32.totalorder 2, %s16
      // Predicated region
      $region49: #{cholesky_variational_rsample.1} parent=5 // pred_check
        %p624 = pneg %p623
      $region50: #{cholesky_variational_rsample.1} parent=5 // pred_check_branch
        %626 = sbr.rel (%p624) target = $region52
      $region51: #{cholesky_variational_rsample.1} parent=5 // pred_region
        %s627 = ssub.s32 %s16, 2
        // Predicated region
        $region53: #{cholesky_variational_rsample.1} parent=51 // pred_check
          %p628 = pneg %p155
        $region54: #{cholesky_variational_rsample.1} parent=51 // pred_check_branch
          %630 = sbr.rel (%p628) target = $region56
        $region55: #{cholesky_variational_rsample.1} parent=51 // pred_region
          %s631 = sand.u32 %s140, 1
          %s632 = scalar_lea.sflag [#allocation7], %s631
          %s633 = sand.u32 %s140, 1
          %s634 = scalar_lea.vmem [#allocation6], %s633
          %635 = dma.done %s632, 16
        $region56: #{cholesky_variational_rsample.1} parent=51 // pred_fallthru
          _
      $region52: #{cholesky_variational_rsample.1} parent=5 // pred_fallthru
        _
    $region6: #{cholesky_variational_rsample.1} parent=1 // loop_footer
      %s20 = sadd.s32 1, %s16
    $region7: #{cholesky_variational_rsample.1} parent=1 // loop_footer_branch
      %15 = sbr.rel target = $region3
    $region8: #{cholesky_variational_rsample.1} parent=1 // loop_exit
      _
    %636 = vsyncpa [#allocation7], 1
    %s637 = scalar_lea.sflag [#allocation7], 1
    %638 = vsyncpa %s637, 1

</llo_original>
